<compile_context>
chip_gen: v6e
topology: v6e:2x2x1
jax: 0.10.0
libtpu: 0.0.40
codegen_flags: <defaults>
</compile_context>

<pallas_src>
from functools import partial

import jax
import jax.numpy as jnp
from jax import lax
from jax.experimental import pallas as pl
from jax.experimental.pallas import tpu as pltpu

BN_EPS = 1e-5
PAD = 128  # lane-dense width for weights / params / output


def _norm_aware_kernel(x1_ref, x2_ref, w1_ref, w2_ref, p_ref, out_ref, *, dim):
    """Single-tile kernel: fused two-branch matmul + train-mode BN + L2 normalize + rescaler.

    x1_ref  : (B, C1)   branch-1 input features (any float dtype; upcast to f32)
    x2_ref  : (B, C2)   branch-2 input features
    w1_ref  : (C1, PAD) bf16 weight; cols [0, d1) are branch-1 weight, rest zero
    w2_ref  : (C2, PAD) bf16 weight; cols [d1, dim) are branch-2 weight, rest zero
    p_ref   : (8, PAD)  f32 packed params
              row 0 = bias, row 1 = gamma, row 2 = beta (concatenated across branches,
              zero-padded past `dim`); p[3,0] = rescaler weight, p[3,1] = rescaler bias.
    out_ref : (B, PAD)  cols [0, dim) = normalized embedding, col `dim` = rescaled norm.
    """
    x1 = x1_ref[...].astype(jnp.float32)                # (B, C1)
    x2 = x2_ref[...].astype(jnp.float32)                # (B, C2)
    w1 = w1_ref[...].astype(jnp.float32)                # (C1, PAD)  bf16 -> f32
    w2 = w2_ref[...].astype(jnp.float32)                # (C2, PAD)

    bias = p_ref[0:1, :]                                # (1, PAD)
    gamma = p_ref[1:2, :]
    beta = p_ref[2:3, :]
    rg = p_ref[3:4, 0:1]                                # (1, 1) rescaler BN weight
    rb = p_ref[3:4, 1:2]                                # (1, 1) rescaler BN bias

    # Fused projection: two MXU matmuls accumulate directly into the concatenated
    # column layout; padding columns (>= dim) stay exactly zero.
    y = jnp.dot(x1, w1, preferred_element_type=jnp.float32)
    y = y + jnp.dot(x2, w2, preferred_element_type=jnp.float32) + bias   # (B, PAD)

    # Train-mode BatchNorm1d over the batch axis (biased variance), one-pass stats + rsqrt.
    mu = jnp.mean(y, axis=0, keepdims=True)                              # (1, PAD)
    msq = jnp.mean(y * y, axis=0, keepdims=True)
    var = msq - mu * mu
    emb = (y - mu) * (gamma * lax.rsqrt(var + BN_EPS)) + beta            # (B, PAD); pad cols == 0

    # Row-wise L2 norm (padding lanes are zero, so the sum only sees the real dim columns).
    ss = jnp.sum(emb * emb, axis=1, keepdims=True)                       # (B, 1)
    norms = jnp.sqrt(ss)                                                 # exact norm for rescaler
    emb_n = emb * lax.rsqrt(jnp.maximum(ss, 1e-24))                      # == emb / clamp(norm, 1e-12)

    # rescaler = BatchNorm1d(1), train mode over the batch of norms (one-pass stats).
    mu_n = jnp.mean(norms, axis=0, keepdims=True)
    msq_n = jnp.mean(norms * norms, axis=0, keepdims=True)
    var_n = msq_n - mu_n * mu_n
    norms_bn = (norms - mu_n) * (rg * lax.rsqrt(var_n + BN_EPS)) + rb    # (B, 1)

    # Lane-dense packed output: one full-width unmasked store.
    lane = lax.broadcasted_iota(jnp.int32, emb_n.shape, 1)
    out_ref[...] = jnp.where(lane == dim, norms_bn, emb_n)


def init_params(key, in_channels=(256, 512), dim=64):
    """Deterministic synthetic init mirroring the module's __init__ (normal std=0.01, zero bias).

    Builds both the per-branch ("logical") parameters used by the reference and the packed
    forms consumed by the kernel (bf16 column-padded weights + (8, PAD) param slab).
    """
    parts = len(in_channels)
    indv = [dim // parts] * parts
    res = dim % parts
    for i in range(1, res + 1):
        indv[-i] += 1
    assert sum(indv) == dim
    c1, c2 = in_channels
    d1, d2 = indv
    k1, k2, k3, k4 = jax.random.split(key, 4)

    # branch weights stored bf16 (the reference upcasts the same values, so kernel == reference math)
    w1 = (0.01 * jax.random.normal(k1, (c1, d1), jnp.float32)).astype(jnp.bfloat16)
    w2 = (0.01 * jax.random.normal(k3, (c2, d2), jnp.float32)).astype(jnp.bfloat16)
    b1 = jnp.zeros((1, d1), jnp.float32)
    b2 = jnp.zeros((1, d2), jnp.float32)
    g1 = 0.01 * jax.random.normal(k2, (1, d1), jnp.float32)
    g2 = 0.01 * jax.random.normal(k4, (1, d2), jnp.float32)
    be1 = jnp.zeros((1, d1), jnp.float32)
    be2 = jnp.zeros((1, d2), jnp.float32)
    rg = jnp.ones((1, 1), jnp.float32)   # rescaler BN1d(1): default weight=1, bias=0
    rb = jnp.zeros((1, 1), jnp.float32)

    # --- packed kernel-side forms -------------------------------------------------------
    W1 = jnp.zeros((c1, PAD), jnp.bfloat16).at[:, :d1].set(w1)
    W2 = jnp.zeros((c2, PAD), jnp.bfloat16).at[:, d1:d1 + d2].set(w2)

    P = jnp.zeros((8, PAD), jnp.float32)
    P = P.at[0, :d1].set(b1[0]).at[0, d1:dim].set(b2[0])
    P = P.at[1, :d1].set(g1[0]).at[1, d1:dim].set(g2[0])
    P = P.at[2, :d1].set(be1[0]).at[2, d1:dim].set(be2[0])
    P = P.at[3, 0].set(rg[0, 0]).at[3, 1].set(rb[0, 0])

    return dict(
        featmap_names=('feat_res4', 'feat_res5'),
        dim=dim, in_channels=(c1, c2), indv=(d1, d2),
        W1=W1, W2=W2, P=P,
        w1=w1, b1=b1, g1=g1, be1=be1,
        w2=w2, b2=b2, g2=g2, be2=be2,
        rg=rg, rb=rb,
    )


def _flatten_fc_input(v):
    if v.ndim == 4:
        assert v.shape[2:] == (1, 1)
        return v.reshape(v.shape[0], v.shape[1])   # free reshape (trailing dims are 1)
    return v


def norm_aware_embedding(featmaps, params):
    """featmaps: dict name -> (B, C, 1, 1) NCHW (or (B, C)). Returns (emb (B,dim), norms (B,))."""
    # TODO(synk): kernel assumes exactly two feature maps (the module's default config).
    names = params['featmap_names']
    x1 = _flatten_fc_input(featmaps[names[0]])     # (B, C1) -- no wrapper-side concat copy
    x2 = _flatten_fc_input(featmaps[names[1]])     # (B, C2)
    B = x1.shape[0]
    c1, c2 = x1.shape[1], x2.shape[1]
    dim = params['dim']

    flops = 2 * B * (c1 + c2) * PAD
    bytes_accessed = (x1.size * x1.dtype.itemsize + x2.size * x2.dtype.itemsize
                      + params['W1'].size * 2 + params['W2'].size * 2
                      + params['P'].size * 4
                      + B * PAD * 4)

    vmem = pl.BlockSpec(memory_space=pltpu.MemorySpace.VMEM)
    out = pl.pallas_call(
        partial(_norm_aware_kernel, dim=dim),
        out_shape=jax.ShapeDtypeStruct((B, PAD), jnp.float32),
        in_specs=[vmem, vmem, vmem, vmem, vmem],
        out_specs=vmem,
        cost_estimate=pl.CostEstimate(flops=flops,
                                      transcendentals=PAD + 2 * B + 1,
                                      bytes_accessed=bytes_accessed),
    )(x1, x2, params['W1'], params['W2'], params['P'])

    emb = out[:, :dim]
    norms = out[:, dim]
    return emb, norms


def norm_aware_embedding_ref(featmaps, params):
    """Pure-JAX reference following the original per-branch PyTorch formulation."""
    def proj_bn(x, w, b, g, be):
        y = x @ w.astype(jnp.float32) + b
        mu = jnp.mean(y, axis=0, keepdims=True)
        var = jnp.mean((y - mu) ** 2, axis=0, keepdims=True)
        return g * (y - mu) / jnp.sqrt(var + BN_EPS) + be

    xs = [_flatten_fc_input(featmaps[name]).astype(jnp.float32)
          for name in params['featmap_names']]
    y1 = proj_bn(xs[0], params['w1'], params['b1'], params['g1'], params['be1'])
    y2 = proj_bn(xs[1], params['w2'], params['b2'], params['g2'], params['be2'])
    emb = jnp.concatenate([y1, y2], axis=1)
    norms = jnp.sqrt(jnp.sum(emb * emb, axis=1, keepdims=True))
    emb_out = emb / jnp.maximum(norms, 1e-12)
    mu = jnp.mean(norms, axis=0, keepdims=True)
    var = jnp.mean((norms - mu) ** 2, axis=0, keepdims=True)
    norms_out = params['rg'] * (norms - mu) / jnp.sqrt(var + BN_EPS) + params['rb']
    return emb_out, jnp.squeeze(norms_out, axis=1)


if __name__ == "__main__":
    key = jax.random.PRNGKey(0)
    k_param, k_x1, k_x2 = jax.random.split(key, 3)

    B, C1, C2, DIM = 8, 256, 512, 64
    params = init_params(k_param, in_channels=(C1, C2), dim=DIM)

    # NCHW feature maps with 1x1 spatial extent, as the PyTorch module expects.
    featmaps = {
        'feat_res4': jax.random.normal(k_x1, (B, C1, 1, 1), jnp.float32),
        'feat_res5': jax.random.normal(k_x2, (B, C2, 1, 1), jnp.float32),
    }

    emb, norms = norm_aware_embedding(featmaps, params)
    emb = jax.block_until_ready(emb)
    norms = jax.block_until_ready(norms)

    emb_ref, norms_ref = norm_aware_embedding_ref(featmaps, params)
    assert emb.shape == (B, DIM) and norms.shape == (B,)
    assert jnp.allclose(emb, emb_ref, rtol=1e-3, atol=1e-4)
    assert jnp.allclose(norms, norms_ref, rtol=1e-3, atol=1e-4)

    print("KERNEL_OK")
</pallas_src>

<mosaic_0001>
module attributes {stable_mosaic.version = 11 : i64} {
  func.func @_norm_aware_kernel(%arg0: memref<8x256xf32, #tpu.memory_space<vmem>>, %arg1: memref<8x512xf32, #tpu.memory_space<vmem>>, %arg2: memref<256x128xbf16, #tpu.memory_space<vmem>>, %arg3: memref<512x128xbf16, #tpu.memory_space<vmem>>, %arg4: memref<8x128xf32, #tpu.memory_space<vmem>>, %arg5: memref<8x128xf32, #tpu.memory_space<vmem>>) attributes {dimension_semantics = [], scalar_prefetch = 0 : i64, scratch_operands = 0 : i64, tpu.core_type = #tpu.core_type<tc>} {
    %c0 = arith.constant 0 : index
    %c0_0 = arith.constant 0 : index
    %0 = vector.load %arg0[%c0, %c0_0] : memref<8x256xf32, #tpu.memory_space<vmem>>, vector<8x256xf32>
    %c0_1 = arith.constant 0 : index
    %c0_2 = arith.constant 0 : index
    %1 = vector.load %arg1[%c0_1, %c0_2] : memref<8x512xf32, #tpu.memory_space<vmem>>, vector<8x512xf32>
    %c0_3 = arith.constant 0 : index
    %c0_4 = arith.constant 0 : index
    %2 = vector.load %arg2[%c0_3, %c0_4] : memref<256x128xbf16, #tpu.memory_space<vmem>>, vector<256x128xbf16>
    %3 = arith.extf %2 : vector<256x128xbf16> to vector<256x128xf32>
    %c0_5 = arith.constant 0 : index
    %c0_6 = arith.constant 0 : index
    %4 = vector.load %arg3[%c0_5, %c0_6] : memref<512x128xbf16, #tpu.memory_space<vmem>>, vector<512x128xbf16>
    %5 = arith.extf %4 : vector<512x128xbf16> to vector<512x128xf32>
    %c0_7 = arith.constant 0 : index
    %c0_8 = arith.constant 0 : index
    %6 = vector.load %arg4[%c0_7, %c0_8] : memref<8x128xf32, #tpu.memory_space<vmem>>, vector<1x128xf32>
    %c1 = arith.constant 1 : index
    %c0_9 = arith.constant 0 : index
    %7 = vector.load %arg4[%c1, %c0_9] : memref<8x128xf32, #tpu.memory_space<vmem>>, vector<1x128xf32>
    %c2 = arith.constant 2 : index
    %c0_10 = arith.constant 0 : index
    %8 = vector.load %arg4[%c2, %c0_10] : memref<8x128xf32, #tpu.memory_space<vmem>>, vector<1x128xf32>
    %c3 = arith.constant 3 : index
    %c0_11 = arith.constant 0 : index
    %9 = vector.load %arg4[%c3, %c0_11] : memref<8x128xf32, #tpu.memory_space<vmem>>, vector<1x1xf32>
    %c3_12 = arith.constant 3 : index
    %c1_13 = arith.constant 1 : index
    %10 = vector.load %arg4[%c3_12, %c1_13] : memref<8x128xf32, #tpu.memory_space<vmem>>, vector<1x1xf32>
    %cst = arith.constant dense<0.000000e+00> : vector<8x128xf32>
    %11 = tpu.matmul %0, %3, %cst {dimension_numbers = #tpu.dot_dimension_numbers<[1], [0], [0], [1], [0, 0, 1, 1], [], []>} : vector<8x256xf32>, vector<256x128xf32>, vector<8x128xf32> -> vector<8x128xf32>
    %cst_14 = arith.constant dense<0.000000e+00> : vector<8x128xf32>
    %12 = tpu.matmul %1, %5, %cst_14 {dimension_numbers = #tpu.dot_dimension_numbers<[1], [0], [0], [1], [0, 0, 1, 1], [], []>} : vector<8x512xf32>, vector<512x128xf32>, vector<8x128xf32> -> vector<8x128xf32>
    %13 = arith.addf %11, %12 : vector<8x128xf32>
    %14 = vector.broadcast %6 : vector<1x128xf32> to vector<8x128xf32>
    %15 = arith.addf %13, %14 : vector<8x128xf32>
    %cst_15 = arith.constant dense<0.000000e+00> : vector<128xf32>
    %16 = vector.multi_reduction <add>, %15, %cst_15 [0] : vector<8x128xf32> to vector<128xf32>
    %17 = vector.shape_cast %16 : vector<128xf32> to vector<1x128xf32>
    %cst_16 = arith.constant 8.000000e+00 : f32
    %18 = vector.broadcast %cst_16 : f32 to vector<1x128xf32>
    %19 = arith.divf %17, %18 : vector<1x128xf32>
    %20 = arith.mulf %15, %15 : vector<8x128xf32>
    %cst_17 = arith.constant dense<0.000000e+00> : vector<128xf32>
    %21 = vector.multi_reduction <add>, %20, %cst_17 [0] : vector<8x128xf32> to vector<128xf32>
    %22 = vector.shape_cast %21 : vector<128xf32> to vector<1x128xf32>
    %cst_18 = arith.constant 8.000000e+00 : f32
    %23 = vector.broadcast %cst_18 : f32 to vector<1x128xf32>
    %24 = arith.divf %22, %23 : vector<1x128xf32>
    %25 = arith.mulf %19, %19 : vector<1x128xf32>
    %26 = arith.subf %24, %25 : vector<1x128xf32>
    %27 = vector.broadcast %19 : vector<1x128xf32> to vector<8x128xf32>
    %28 = arith.subf %15, %27 : vector<8x128xf32>
    %cst_19 = arith.constant 9.99999974E-6 : f32
    %29 = vector.broadcast %cst_19 : f32 to vector<1x128xf32>
    %30 = arith.addf %26, %29 : vector<1x128xf32>
    %31 = math.rsqrt %30 : vector<1x128xf32>
    %32 = arith.mulf %7, %31 : vector<1x128xf32>
    %33 = vector.broadcast %32 : vector<1x128xf32> to vector<8x128xf32>
    %34 = arith.mulf %28, %33 : vector<8x128xf32>
    %35 = vector.broadcast %8 : vector<1x128xf32> to vector<8x128xf32>
    %36 = arith.addf %34, %35 : vector<8x128xf32>
    %37 = arith.mulf %36, %36 : vector<8x128xf32>
    %cst_20 = arith.constant dense<0.000000e+00> : vector<8xf32>
    %38 = vector.multi_reduction <add>, %37, %cst_20 [1] : vector<8x128xf32> to vector<8xf32>
    %39 = vector.shape_cast %38 : vector<8xf32> to vector<8x1xf32>
    %40 = math.sqrt %39 : vector<8x1xf32>
    %cst_21 = arith.constant 1.000000e-24 : f32
    %41 = vector.broadcast %cst_21 : f32 to vector<8x1xf32>
    %42 = arith.maximumf %39, %41 : vector<8x1xf32>
    %43 = math.rsqrt %42 : vector<8x1xf32>
    %44 = vector.broadcast %43 : vector<8x1xf32> to vector<8x128xf32>
    %45 = arith.mulf %36, %44 : vector<8x128xf32>
    %cst_22 = arith.constant dense<0.000000e+00> : vector<1xf32>
    %46 = vector.multi_reduction <add>, %40, %cst_22 [0] : vector<8x1xf32> to vector<1xf32>
    %47 = vector.shape_cast %46 : vector<1xf32> to vector<1x1xf32>
    %cst_23 = arith.constant 8.000000e+00 : f32
    %48 = vector.broadcast %cst_23 : f32 to vector<1x1xf32>
    %49 = arith.divf %47, %48 : vector<1x1xf32>
    %50 = arith.mulf %40, %40 : vector<8x1xf32>
    %cst_24 = arith.constant dense<0.000000e+00> : vector<1xf32>
    %51 = vector.multi_reduction <add>, %50, %cst_24 [0] : vector<8x1xf32> to vector<1xf32>
    %52 = vector.shape_cast %51 : vector<1xf32> to vector<1x1xf32>
    %cst_25 = arith.constant 8.000000e+00 : f32
    %53 = vector.broadcast %cst_25 : f32 to vector<1x1xf32>
    %54 = arith.divf %52, %53 : vector<1x1xf32>
    %55 = arith.mulf %49, %49 : vector<1x1xf32>
    %56 = arith.subf %54, %55 : vector<1x1xf32>
    %57 = vector.broadcast %49 : vector<1x1xf32> to vector<8x1xf32>
    %58 = arith.subf %40, %57 : vector<8x1xf32>
    %cst_26 = arith.constant 9.99999974E-6 : f32
    %59 = vector.broadcast %cst_26 : f32 to vector<1x1xf32>
    %60 = arith.addf %56, %59 : vector<1x1xf32>
    %61 = math.rsqrt %60 : vector<1x1xf32>
    %62 = arith.mulf %9, %61 : vector<1x1xf32>
    %63 = vector.broadcast %62 : vector<1x1xf32> to vector<8x1xf32>
    %64 = arith.mulf %58, %63 : vector<8x1xf32>
    %65 = vector.broadcast %10 : vector<1x1xf32> to vector<8x1xf32>
    %66 = arith.addf %64, %65 : vector<8x1xf32>
    %67 = tpu.iota {dimensions = array<i32: 1>} : vector<8x128xi32>
    %c64_i32 = arith.constant 64 : i32
    %68 = vector.broadcast %c64_i32 : i32 to vector<8x128xi32>
    %69 = arith.cmpi eq, %67, %68 : vector<8x128xi32>
    %70 = vector.shape_cast %66 : vector<8x1xf32> to vector<8x1xf32>
    %71 = vector.broadcast %70 : vector<8x1xf32> to vector<8x128xf32>
    %72 = arith.select %69, %71, %45 : vector<8x128xi1>, vector<8x128xf32>
    %c0_27 = arith.constant 0 : index
    %c0_28 = arith.constant 0 : index
    %73 = vector.load %arg5[%c0_27, %c0_28] : memref<8x128xf32, #tpu.memory_space<vmem>>, vector<8x128xf32>
    tpu.vector_store %arg5[%c0_27, %c0_28], %72 {strides = array<i32>} : memref<8x128xf32, #tpu.memory_space<vmem>>, vector<8x128xf32>,
    return
  }
}

</mosaic_0001>

<llo_original>
// kernel: tpu_custom_call.1
$region0: #{tpu_custom_call.1}
  #allocation0 [shape = 'u32[]', space=smem, size = 0x4, offset = 0x4, fixed_abs, tag = 'smem constant byte address 0x4 - core index']
  #allocation1 [shape = 'u32[144,128]{1,0:T(1,128)}', space=vmem, size = 0x12000, scoped, tag = 'internal scratch']
  %s0 = inlined_call_operand.hbm [shape: f32[8,256], index: 0, kind: input, shape index: {}]
  %s1 = inlined_call_operand.hbm [shape: f32[8,512], index: 1, kind: input, shape index: {}]
  %s2 = inlined_call_operand.hbm [shape: bf16[256,128], index: 2, kind: input, shape index: {}]
  %s3 = inlined_call_operand.hbm [shape: bf16[512,128], index: 3, kind: input, shape index: {}]
  %s4 = inlined_call_operand.hbm [shape: f32[8,128], index: 4, kind: input, shape index: {}]
  %s5 = inlined_call_operand.hbm [shape: f32[8,128], index: 5, kind: output, shape index: {}]
  %s6 = sld [smem:[#allocation0]]
  $region50: #{tpu_custom_call.1} parent=0
    _
  %s8 = ssub.s32 1, %s6
  %s9 = scalar_select 0, %s8, %s6
  $region1: #{tpu_custom_call.1} parent=0
    #allocation2 [shape = 'u8[8192]{0}', space=vmem, size = 0x2000, scoped, tag = 'input window, operand 0, single buffered']
    #allocation3 [shape = 's32[1]{0}', space=sflag, size = 0x4, scoped, tag = 'scoped memory for tpu_custom_call.1']
    #allocation4 [shape = 's32[1]{0}', space=sflag, size = 0x4, scoped, tag = 'scoped memory for tpu_custom_call.1']
    #allocation5 [shape = 'u8[16384]{0}', space=vmem, size = 0x4000, scoped, tag = 'input window, operand 1, single buffered']
    #allocation6 [shape = 's32[1]{0}', space=sflag, size = 0x4, scoped, tag = 'scoped memory for tpu_custom_call.1']
    #allocation7 [shape = 'u8[65536]{0}', space=vmem, size = 0x10000, scoped, tag = 'input window, operand 2, single buffered']
    #allocation8 [shape = 'u8[131072]{0}', space=vmem, size = 0x20000, scoped, tag = 'input window, operand 3, single buffered']
    #allocation9 [shape = 's32[1]{0}', space=sflag, size = 0x4, scoped, tag = 'scoped memory for tpu_custom_call.1']
    #allocation10 [shape = 'u8[4096]{0}', space=vmem, size = 0x1000, scoped, tag = 'input window, operand 4, single buffered']
    #allocation11 [shape = 'u8[4096]{0}', space=vmem, size = 0x1000, scoped, tag = 'output window, operand 0, single buffered']
    %10 = vsyncpa [#allocation3], 0
    %11 = vsyncpa [#allocation6], 0
    %12 = vsyncpa [#allocation9], 0
    %13 = vsyncpa [#allocation4], 0
    // Predicated region
    $region2: #{tpu_custom_call.1} parent=1 // pred_check
      _
    $region3: #{tpu_custom_call.1} parent=1 // pred_check_branch
      %15 = sbr.rel (0) target = $region5
    $region4: #{tpu_custom_call.1} parent=1 // pred_region
      %s17 = ssub.s32 256, 256
      %18 = vsyncadd [#allocation3], %s17
      %s20 = sshll.u32 [#allocation2], 4
      %s21 = int_to_ptr.vmem [resolvable:$true] %s20
      %23 = dma.hbm_to_vmem [thread:$0]  %s0, 256, %s21, [#allocation3]
    $region5: #{tpu_custom_call.1} parent=1 // pred_fallthru
      _
    // Predicated region
    $region6: #{tpu_custom_call.1} parent=1 // pred_check
      _
    $region7: #{tpu_custom_call.1} parent=1 // pred_check_branch
      %25 = sbr.rel (0) target = $region9
    $region8: #{tpu_custom_call.1} parent=1 // pred_region
      %s27 = ssub.s32 512, 512
      %28 = vsyncadd [#allocation6], %s27
      %s30 = sshll.u32 [#allocation5], 4
      %s31 = int_to_ptr.vmem [resolvable:$true] %s30
      %33 = dma.hbm_to_vmem [thread:$0]  %s1, 512, %s31, [#allocation6]
    $region9: #{tpu_custom_call.1} parent=1 // pred_fallthru
      _
    // Predicated region
    $region10: #{tpu_custom_call.1} parent=1 // pred_check
      _
    $region11: #{tpu_custom_call.1} parent=1 // pred_check_branch
      %35 = sbr.rel (0) target = $region13
    $region12: #{tpu_custom_call.1} parent=1 // pred_region
      %s37 = ssub.s32 2048, 2048
      %38 = vsyncadd [#allocation6], %s37
      %s39 = sshll.u32 [#allocation7], 4
      %s40 = int_to_ptr.vmem [resolvable:$true] %s39
      %45 = dma.hbm_to_vmem [thread:$0]  %s2, 2048, %s40, [#allocation6], 64, 64, 4
    $region13: #{tpu_custom_call.1} parent=1 // pred_fallthru
      _
    // Predicated region
    $region14: #{tpu_custom_call.1} parent=1 // pred_check
      _
    $region15: #{tpu_custom_call.1} parent=1 // pred_check_branch
      %47 = sbr.rel (0) target = $region17
    $region16: #{tpu_custom_call.1} parent=1 // pred_region
      %s49 = ssub.s32 4096, 4096
      %50 = vsyncadd [#allocation9], %s49
      %s51 = sshll.u32 [#allocation8], 4
      %s52 = int_to_ptr.vmem [resolvable:$true] %s51
      %57 = dma.hbm_to_vmem [thread:$0]  %s3, 4096, %s52, [#allocation9], 64, 64, 4
    $region17: #{tpu_custom_call.1} parent=1 // pred_fallthru
      _
    // Predicated region
    $region18: #{tpu_custom_call.1} parent=1 // pred_check
      _
    $region19: #{tpu_custom_call.1} parent=1 // pred_check_branch
      %59 = sbr.rel (0) target = $region21
    $region20: #{tpu_custom_call.1} parent=1 // pred_region
      %s61 = ssub.s32 128, 128
      %62 = vsyncadd [#allocation9], %s61
      %s64 = sshll.u32 [#allocation10], 4
      %s65 = int_to_ptr.vmem [resolvable:$true] %s64
      %67 = dma.hbm_to_vmem [thread:$0]  %s4, 128, %s65, [#allocation9]
    $region21: #{tpu_custom_call.1} parent=1 // pred_fallthru
      _
    // Predicated region
    $region22: #{tpu_custom_call.1} parent=1 // pred_check
      _
    $region23: #{tpu_custom_call.1} parent=1 // pred_check_branch
      %69 = sbr.rel (0) target = $region25
    $region24: #{tpu_custom_call.1} parent=1 // pred_region
      %70 = dma.done [#allocation3], 256
    $region25: #{tpu_custom_call.1} parent=1 // pred_fallthru
      _
    // Predicated region
    $region26: #{tpu_custom_call.1} parent=1 // pred_check
      _
    $region27: #{tpu_custom_call.1} parent=1 // pred_check_branch
      %72 = sbr.rel (0) target = $region29
    $region28: #{tpu_custom_call.1} parent=1 // pred_region
      %73 = dma.done [#allocation6], 512
    $region29: #{tpu_custom_call.1} parent=1 // pred_fallthru
      _
    // Predicated region
    $region30: #{tpu_custom_call.1} parent=1 // pred_check
      _
    $region31: #{tpu_custom_call.1} parent=1 // pred_check_branch
      %75 = sbr.rel (0) target = $region33
    $region32: #{tpu_custom_call.1} parent=1 // pred_region
      %76 = dma.done [#allocation6], 2048
    $region33: #{tpu_custom_call.1} parent=1 // pred_fallthru
      _
    // Predicated region
    $region34: #{tpu_custom_call.1} parent=1 // pred_check
      _
    $region35: #{tpu_custom_call.1} parent=1 // pred_check_branch
      %78 = sbr.rel (0) target = $region37
    $region36: #{tpu_custom_call.1} parent=1 // pred_region
      %79 = dma.done [#allocation9], 4096
    $region37: #{tpu_custom_call.1} parent=1 // pred_fallthru
      _
    // Predicated region
    $region38: #{tpu_custom_call.1} parent=1 // pred_check
      _
    $region39: #{tpu_custom_call.1} parent=1 // pred_check_branch
      %81 = sbr.rel (0) target = $region41
    $region40: #{tpu_custom_call.1} parent=1 // pred_region
      %82 = dma.done [#allocation9], 128
    $region41: #{tpu_custom_call.1} parent=1 // pred_fallthru
      _
    %v83 = vld [vmem:[#allocation2] sm:$0xff]
    %v84 = vld [vmem:[#allocation2 + $0x8] sm:$0xff]
    %v85 = vld [vmem:[#allocation5] sm:$0xff]
    %v86 = vld [vmem:[#allocation5 + $0x8] sm:$0xff]
    %v87 = vld [vmem:[#allocation5 + $0x10] sm:$0xff]
    %v88 = vld [vmem:[#allocation5 + $0x18] sm:$0xff]
    %v89 = vld [vmem:[#allocation7] sm:$0xf]
    %v90 = vld [vmem:[#allocation7 + $0x4] sm:$0xf]
    %v91 = vld [vmem:[#allocation7 + $0x8] sm:$0xf]
    %v92 = vld [vmem:[#allocation7 + $0xc] sm:$0xf]
    %v93 = vld [vmem:[#allocation7 + $0x10] sm:$0xf]
    %v94 = vld [vmem:[#allocation7 + $0x14] sm:$0xf]
    %v95 = vld [vmem:[#allocation7 + $0x18] sm:$0xf]
    %v96 = vld [vmem:[#allocation7 + $0x1c] sm:$0xf]
    %v97 = vld [vmem:[#allocation7 + $0x20] sm:$0xf]
    %v98 = vld [vmem:[#allocation7 + $0x24] sm:$0xf]
    %v99 = vld [vmem:[#allocation7 + $0x28] sm:$0xf]
    %v100 = vld [vmem:[#allocation7 + $0x2c] sm:$0xf]
    %v101 = vld [vmem:[#allocation7 + $0x30] sm:$0xf]
    %v102 = vld [vmem:[#allocation7 + $0x34] sm:$0xf]
    %v103 = vld [vmem:[#allocation7 + $0x38] sm:$0xf]
    %v104 = vld [vmem:[#allocation7 + $0x3c] sm:$0xf]
    %v105 = vld [vmem:[#allocation7 + $0x40] sm:$0xf]
    %v106 = vld [vmem:[#allocation7 + $0x44] sm:$0xf]
    %v107 = vld [vmem:[#allocation7 + $0x48] sm:$0xf]
    %v108 = vld [vmem:[#allocation7 + $0x4c] sm:$0xf]
    %v109 = vld [vmem:[#allocation7 + $0x50] sm:$0xf]
    %v110 = vld [vmem:[#allocation7 + $0x54] sm:$0xf]
    %v111 = vld [vmem:[#allocation7 + $0x58] sm:$0xf]
    %v112 = vld [vmem:[#allocation7 + $0x5c] sm:$0xf]
    %v113 = vld [vmem:[#allocation7 + $0x60] sm:$0xf]
    %v114 = vld [vmem:[#allocation7 + $0x64] sm:$0xf]
    %v115 = vld [vmem:[#allocation7 + $0x68] sm:$0xf]
    %v116 = vld [vmem:[#allocation7 + $0x6c] sm:$0xf]
    %v117 = vld [vmem:[#allocation7 + $0x70] sm:$0xf]
    %v118 = vld [vmem:[#allocation7 + $0x74] sm:$0xf]
    %v119 = vld [vmem:[#allocation7 + $0x78] sm:$0xf]
    %v120 = vld [vmem:[#allocation7 + $0x7c] sm:$0xf]
    %v121 = vunpack.c.l.bf16 %v89
    %v122 = vunpack.c.l.bf16 %v90
    %v123 = vunpack.c.l.bf16 %v91
    %v124 = vunpack.c.l.bf16 %v92
    %v125 = vunpack.c.l.bf16 %v93
    %v126 = vunpack.c.l.bf16 %v94
    %v127 = vunpack.c.l.bf16 %v95
    %v128 = vunpack.c.l.bf16 %v96
    %v129 = vunpack.c.l.bf16 %v97
    %v130 = vunpack.c.l.bf16 %v98
    %v131 = vunpack.c.l.bf16 %v99
    %v132 = vunpack.c.l.bf16 %v100
    %v133 = vunpack.c.l.bf16 %v101
    %v134 = vunpack.c.l.bf16 %v102
    %v135 = vunpack.c.l.bf16 %v103
    %v136 = vunpack.c.l.bf16 %v104
    %v137 = vunpack.c.l.bf16 %v105
    %v138 = vunpack.c.l.bf16 %v106
    %v139 = vunpack.c.l.bf16 %v107
    %v140 = vunpack.c.l.bf16 %v108
    %v141 = vunpack.c.l.bf16 %v109
    %v142 = vunpack.c.l.bf16 %v110
    %v143 = vunpack.c.l.bf16 %v111
    %v144 = vunpack.c.l.bf16 %v112
    %v145 = vunpack.c.l.bf16 %v113
    %v146 = vunpack.c.l.bf16 %v114
    %v147 = vunpack.c.l.bf16 %v115
    %v148 = vunpack.c.l.bf16 %v116
    %v149 = vunpack.c.l.bf16 %v117
    %v150 = vunpack.c.l.bf16 %v118
    %v151 = vunpack.c.l.bf16 %v119
    %v152 = vunpack.c.l.bf16 %v120
    %v153 = vld [vmem:[#allocation8] sm:$0xf]
    %v154 = vld [vmem:[#allocation8 + $0x4] sm:$0xf]
    %v155 = vld [vmem:[#allocation8 + $0x8] sm:$0xf]
    %v156 = vld [vmem:[#allocation8 + $0xc] sm:$0xf]
    %v157 = vld [vmem:[#allocation8 + $0x10] sm:$0xf]
    %v158 = vld [vmem:[#allocation8 + $0x14] sm:$0xf]
    %v159 = vld [vmem:[#allocation8 + $0x18] sm:$0xf]
    %v160 = vld [vmem:[#allocation8 + $0x1c] sm:$0xf]
    %v161 = vld [vmem:[#allocation8 + $0x20] sm:$0xf]
    %v162 = vld [vmem:[#allocation8 + $0x24] sm:$0xf]
    %v163 = vld [vmem:[#allocation8 + $0x28] sm:$0xf]
    %v164 = vld [vmem:[#allocation8 + $0x2c] sm:$0xf]
    %v165 = vld [vmem:[#allocation8 + $0x30] sm:$0xf]
    %v166 = vld [vmem:[#allocation8 + $0x34] sm:$0xf]
    %v167 = vld [vmem:[#allocation8 + $0x38] sm:$0xf]
    %v168 = vld [vmem:[#allocation8 + $0x3c] sm:$0xf]
    %v169 = vld [vmem:[#allocation8 + $0x40] sm:$0xf]
    %v170 = vld [vmem:[#allocation8 + $0x44] sm:$0xf]
    %v171 = vld [vmem:[#allocation8 + $0x48] sm:$0xf]
    %v172 = vld [vmem:[#allocation8 + $0x4c] sm:$0xf]
    %v173 = vld [vmem:[#allocation8 + $0x50] sm:$0xf]
    %v174 = vld [vmem:[#allocation8 + $0x54] sm:$0xf]
    %v175 = vld [vmem:[#allocation8 + $0x58] sm:$0xf]
    %v176 = vld [vmem:[#allocation8 + $0x5c] sm:$0xf]
    %v177 = vld [vmem:[#allocation8 + $0x60] sm:$0xf]
    %v178 = vld [vmem:[#allocation8 + $0x64] sm:$0xf]
    %v179 = vld [vmem:[#allocation8 + $0x68] sm:$0xf]
    %v180 = vld [vmem:[#allocation8 + $0x6c] sm:$0xf]
    %v181 = vld [vmem:[#allocation8 + $0x70] sm:$0xf]
    %v182 = vld [vmem:[#allocation8 + $0x74] sm:$0xf]
    %v183 = vld [vmem:[#allocation8 + $0x78] sm:$0xf]
    %v184 = vld [vmem:[#allocation8 + $0x7c] sm:$0xf]
    %v185 = vld [vmem:[#allocation8 + $0x80] sm:$0xf]
    %v186 = vld [vmem:[#allocation8 + $0x84] sm:$0xf]
    %v187 = vld [vmem:[#allocation8 + $0x88] sm:$0xf]
    %v188 = vld [vmem:[#allocation8 + $0x8c] sm:$0xf]
    %v189 = vld [vmem:[#allocation8 + $0x90] sm:$0xf]
    %v190 = vld [vmem:[#allocation8 + $0x94] sm:$0xf]
    %v191 = vld [vmem:[#allocation8 + $0x98] sm:$0xf]
    %v192 = vld [vmem:[#allocation8 + $0x9c] sm:$0xf]
    %v193 = vld [vmem:[#allocation8 + $0xa0] sm:$0xf]
    %v194 = vld [vmem:[#allocation8 + $0xa4] sm:$0xf]
    %v195 = vld [vmem:[#allocation8 + $0xa8] sm:$0xf]
    %v196 = vld [vmem:[#allocation8 + $0xac] sm:$0xf]
    %v197 = vld [vmem:[#allocation8 + $0xb0] sm:$0xf]
    %v198 = vld [vmem:[#allocation8 + $0xb4] sm:$0xf]
    %v199 = vld [vmem:[#allocation8 + $0xb8] sm:$0xf]
    %v200 = vld [vmem:[#allocation8 + $0xbc] sm:$0xf]
    %v201 = vld [vmem:[#allocation8 + $0xc0] sm:$0xf]
    %v202 = vld [vmem:[#allocation8 + $0xc4] sm:$0xf]
    %v203 = vld [vmem:[#allocation8 + $0xc8] sm:$0xf]
    %v204 = vld [vmem:[#allocation8 + $0xcc] sm:$0xf]
    %v205 = vld [vmem:[#allocation8 + $0xd0] sm:$0xf]
    %v206 = vld [vmem:[#allocation8 + $0xd4] sm:$0xf]
    %v207 = vld [vmem:[#allocation8 + $0xd8] sm:$0xf]
    %v208 = vld [vmem:[#allocation8 + $0xdc] sm:$0xf]
    %v209 = vld [vmem:[#allocation8 + $0xe0] sm:$0xf]
    %v210 = vld [vmem:[#allocation8 + $0xe4] sm:$0xf]
    %v211 = vld [vmem:[#allocation8 + $0xe8] sm:$0xf]
    %v212 = vld [vmem:[#allocation8 + $0xec] sm:$0xf]
    %v213 = vld [vmem:[#allocation8 + $0xf0] sm:$0xf]
    %v214 = vld [vmem:[#allocation8 + $0xf4] sm:$0xf]
    %v215 = vld [vmem:[#allocation8 + $0xf8] sm:$0xf]
    %v216 = vld [vmem:[#allocation8 + $0xfc] sm:$0xf]
    %v217 = vunpack.c.l.bf16 %v153
    %v218 = vunpack.c.l.bf16 %v154
    %v219 = vunpack.c.l.bf16 %v155
    %v220 = vunpack.c.l.bf16 %v156
    %v221 = vunpack.c.l.bf16 %v157
    %v222 = vunpack.c.l.bf16 %v158
    %v223 = vunpack.c.l.bf16 %v159
    %v224 = vunpack.c.l.bf16 %v160
    %v225 = vunpack.c.l.bf16 %v161
    %v226 = vunpack.c.l.bf16 %v162
    %v227 = vunpack.c.l.bf16 %v163
    %v228 = vunpack.c.l.bf16 %v164
    %v229 = vunpack.c.l.bf16 %v165
    %v230 = vunpack.c.l.bf16 %v166
    %v231 = vunpack.c.l.bf16 %v167
    %v232 = vunpack.c.l.bf16 %v168
    %v233 = vunpack.c.l.bf16 %v169
    %v234 = vunpack.c.l.bf16 %v170
    %v235 = vunpack.c.l.bf16 %v171
    %v236 = vunpack.c.l.bf16 %v172
    %v237 = vunpack.c.l.bf16 %v173
    %v238 = vunpack.c.l.bf16 %v174
    %v239 = vunpack.c.l.bf16 %v175
    %v240 = vunpack.c.l.bf16 %v176
    %v241 = vunpack.c.l.bf16 %v177
    %v242 = vunpack.c.l.bf16 %v178
    %v243 = vunpack.c.l.bf16 %v179
    %v244 = vunpack.c.l.bf16 %v180
    %v245 = vunpack.c.l.bf16 %v181
    %v246 = vunpack.c.l.bf16 %v182
    %v247 = vunpack.c.l.bf16 %v183
    %v248 = vunpack.c.l.bf16 %v184
    %v249 = vunpack.c.l.bf16 %v185
    %v250 = vunpack.c.l.bf16 %v186
    %v251 = vunpack.c.l.bf16 %v187
    %v252 = vunpack.c.l.bf16 %v188
    %v253 = vunpack.c.l.bf16 %v189
    %v254 = vunpack.c.l.bf16 %v190
    %v255 = vunpack.c.l.bf16 %v191
    %v256 = vunpack.c.l.bf16 %v192
    %v257 = vunpack.c.l.bf16 %v193
    %v258 = vunpack.c.l.bf16 %v194
    %v259 = vunpack.c.l.bf16 %v195
    %v260 = vunpack.c.l.bf16 %v196
    %v261 = vunpack.c.l.bf16 %v197
    %v262 = vunpack.c.l.bf16 %v198
    %v263 = vunpack.c.l.bf16 %v199
    %v264 = vunpack.c.l.bf16 %v200
    %v265 = vunpack.c.l.bf16 %v201
    %v266 = vunpack.c.l.bf16 %v202
    %v267 = vunpack.c.l.bf16 %v203
    %v268 = vunpack.c.l.bf16 %v204
    %v269 = vunpack.c.l.bf16 %v205
    %v270 = vunpack.c.l.bf16 %v206
    %v271 = vunpack.c.l.bf16 %v207
    %v272 = vunpack.c.l.bf16 %v208
    %v273 = vunpack.c.l.bf16 %v209
    %v274 = vunpack.c.l.bf16 %v210
    %v275 = vunpack.c.l.bf16 %v211
    %v276 = vunpack.c.l.bf16 %v212
    %v277 = vunpack.c.l.bf16 %v213
    %v278 = vunpack.c.l.bf16 %v214
    %v279 = vunpack.c.l.bf16 %v215
    %v280 = vunpack.c.l.bf16 %v216
    %v281 = vld [vmem:[#allocation10] sm:$0x1]
    %v282 = vld [vmem:[#allocation10 + $0x1] sm:$0x1]
    %v283 = vld [vmem:[#allocation10 + $0x2] sm:$0x1]
    %v284 = vld [vmem:[#allocation10 + $0x3] sm:$0x1]
    %285 = vmatprep.subr.mxu0 0.0
    %286 = vmatpush1.msra.mxu0 %v232
    %287 = vmatprep.subr.mxu0 0.0
    %288 = vmatpush1.msra.mxu0 %v231
    %289 = vmatprep.subr.mxu0 0.0
    %290 = vmatpush1.msra.mxu0 %v230
    %291 = vmatprep.subr.mxu0 0.0
    %292 = vmatpush1.msra.mxu0 %v229
    %293 = vmatprep.subr.mxu0 0.0
    %294 = vmatpush1.msra.mxu0 %v228
    %295 = vmatprep.subr.mxu0 0.0
    %296 = vmatpush1.msra.mxu0 %v227
    %297 = vmatprep.subr.mxu0 0.0
    %298 = vmatpush1.msra.mxu0 %v226
    %299 = vmatprep.subr.mxu0 0.0
    %300 = vmatpush1.msra.mxu0 %v225
    %301 = vmatprep.subr.mxu0 0.0
    %302 = vmatpush1.msra.mxu0 %v224
    %303 = vmatprep.subr.mxu0 0.0
    %304 = vmatpush1.msra.mxu0 %v223
    %305 = vmatprep.subr.mxu0 0.0
    %306 = vmatpush1.msra.mxu0 %v222
    %307 = vmatprep.subr.mxu0 0.0
    %308 = vmatpush1.msra.mxu0 %v221
    %309 = vmatprep.subr.mxu0 0.0
    %310 = vmatpush1.msra.mxu0 %v220
    %311 = vmatprep.subr.mxu0 0.0
    %312 = vmatpush1.msra.mxu0 %v219
    %313 = vmatprep.subr.mxu0 0.0
    %314 = vmatpush1.msra.mxu0 %v218
    %315 = vmatprep.subr.mxu0 0.0
    %316 = vmatpush1.msra.mxu0 %v217
    %317 = vmatprep.subr.mxu0 0.0
    %318 = vmatpush2.msra.mxu0 %v248
    %319 = vmatprep.subr.mxu0 0.0
    %320 = vmatpush2.msra.mxu0 %v247
    %321 = vmatprep.subr.mxu0 0.0
    %322 = vmatpush2.msra.mxu0 %v246
    %323 = vmatprep.subr.mxu0 0.0
    %324 = vmatpush2.msra.mxu0 %v245
    %325 = vmatprep.subr.mxu0 0.0
    %326 = vmatpush2.msra.mxu0 %v244
    %327 = vmatprep.subr.mxu0 0.0
    %328 = vmatpush2.msra.mxu0 %v243
    %329 = vmatprep.subr.mxu0 0.0
    %330 = vmatpush2.msra.mxu0 %v242
    %331 = vmatprep.subr.mxu0 0.0
    %332 = vmatpush2.msra.mxu0 %v241
    %333 = vmatprep.subr.mxu0 0.0
    %334 = vmatpush2.msra.mxu0 %v240
    %335 = vmatprep.subr.mxu0 0.0
    %336 = vmatpush2.msra.mxu0 %v239
    %337 = vmatprep.subr.mxu0 0.0
    %338 = vmatpush2.msra.mxu0 %v238
    %339 = vmatprep.subr.mxu0 0.0
    %340 = vmatpush2.msra.mxu0 %v237
    %341 = vmatprep.subr.mxu0 0.0
    %342 = vmatpush2.msra.mxu0 %v236
    %343 = vmatprep.subr.mxu0 0.0
    %344 = vmatpush2.msra.mxu0 %v235
    %345 = vmatprep.subr.mxu0 0.0
    %346 = vmatpush2.msra.mxu0 %v234
    %347 = vmatprep.subr.mxu0 0.0
    %348 = vmatpush2.msra.mxu0 %v233
    %349 = vmatprep.mubr.f32.mxu0 %v86
    %350 = vmatmul.mubr.f32.gmra.mxu0 %v85
    %v351 = vpop.f32.mrf.mxu0
    %v352 = vadd.f32 0.0, %v351
    %v353 = vpop.f32.mrf.mxu0
    %354 = vdwg.mxu0
    %355 = vmatprep.subr.mxu0 0.0
    %356 = vmatpush1.msra.mxu0 %v264
    %357 = vmatprep.subr.mxu0 0.0
    %358 = vmatpush1.msra.mxu0 %v263
    %359 = vmatprep.subr.mxu0 0.0
    %360 = vmatpush1.msra.mxu0 %v262
    %361 = vmatprep.subr.mxu0 0.0
    %362 = vmatpush1.msra.mxu0 %v261
    %363 = vmatprep.subr.mxu0 0.0
    %364 = vmatpush1.msra.mxu0 %v260
    %365 = vmatprep.subr.mxu0 0.0
    %366 = vmatpush1.msra.mxu0 %v259
    %367 = vmatprep.subr.mxu0 0.0
    %368 = vmatpush1.msra.mxu0 %v258
    %369 = vmatprep.subr.mxu0 0.0
    %370 = vmatpush1.msra.mxu0 %v257
    %371 = vmatprep.subr.mxu0 0.0
    %372 = vmatpush1.msra.mxu0 %v256
    %373 = vmatprep.subr.mxu0 0.0
    %374 = vmatpush1.msra.mxu0 %v255
    %375 = vmatprep.subr.mxu0 0.0
    %376 = vmatpush1.msra.mxu0 %v254
    %377 = vmatprep.subr.mxu0 0.0
    %378 = vmatpush1.msra.mxu0 %v253
    %379 = vmatprep.subr.mxu0 0.0
    %380 = vmatpush1.msra.mxu0 %v252
    %381 = vmatprep.subr.mxu0 0.0
    %382 = vmatpush1.msra.mxu0 %v251
    %383 = vmatprep.subr.mxu0 0.0
    %384 = vmatpush1.msra.mxu0 %v250
    %385 = vmatprep.subr.mxu0 0.0
    %386 = vmatpush1.msra.mxu0 %v249
    %387 = vmatprep.subr.mxu0 0.0
    %388 = vmatpush2.msra.mxu0 %v280
    %389 = vmatprep.subr.mxu0 0.0
    %390 = vmatpush2.msra.mxu0 %v279
    %391 = vmatprep.subr.mxu0 0.0
    %392 = vmatpush2.msra.mxu0 %v278
    %393 = vmatprep.subr.mxu0 0.0
    %394 = vmatpush2.msra.mxu0 %v277
    %395 = vmatprep.subr.mxu0 0.0
    %396 = vmatpush2.msra.mxu0 %v276
    %397 = vmatprep.subr.mxu0 0.0
    %398 = vmatpush2.msra.mxu0 %v275
    %399 = vmatprep.subr.mxu0 0.0
    %400 = vmatpush2.msra.mxu0 %v274
    %401 = vmatprep.subr.mxu0 0.0
    %402 = vmatpush2.msra.mxu0 %v273
    %403 = vmatprep.subr.mxu0 0.0
    %404 = vmatpush2.msra.mxu0 %v272
    %405 = vmatprep.subr.mxu0 0.0
    %406 = vmatpush2.msra.mxu0 %v271
    %407 = vmatprep.subr.mxu0 0.0
    %408 = vmatpush2.msra.mxu0 %v270
    %409 = vmatprep.subr.mxu0 0.0
    %410 = vmatpush2.msra.mxu0 %v269
    %411 = vmatprep.subr.mxu0 0.0
    %412 = vmatpush2.msra.mxu0 %v268
    %413 = vmatprep.subr.mxu0 0.0
    %414 = vmatpush2.msra.mxu0 %v267
    %415 = vmatprep.subr.mxu0 0.0
    %416 = vmatpush2.msra.mxu0 %v266
    %417 = vmatprep.subr.mxu0 0.0
    %418 = vmatpush2.msra.mxu0 %v265
    %419 = vmatprep.mubr.f32.mxu0 %v88
    %420 = vmatmul.mubr.f32.gmra.mxu0 %v87
    %v421 = vpop.f32.mrf.mxu0
    %v422 = vadd.f32 %v352, %v421
    %v423 = vpop.f32.mrf.mxu0
    %424 = vdwg.mxu0
    %425 = vmatprep.subr.mxu0 0.0
    %426 = vmatpush1.msra.mxu0 %v136
    %427 = vmatprep.subr.mxu0 0.0
    %428 = vmatpush1.msra.mxu0 %v135
    %429 = vmatprep.subr.mxu0 0.0
    %430 = vmatpush1.msra.mxu0 %v134
    %431 = vmatprep.subr.mxu0 0.0
    %432 = vmatpush1.msra.mxu0 %v133
    %433 = vmatprep.subr.mxu0 0.0
    %434 = vmatpush1.msra.mxu0 %v132
    %435 = vmatprep.subr.mxu0 0.0
    %436 = vmatpush1.msra.mxu0 %v131
    %437 = vmatprep.subr.mxu0 0.0
    %438 = vmatpush1.msra.mxu0 %v130
    %439 = vmatprep.subr.mxu0 0.0
    %440 = vmatpush1.msra.mxu0 %v129
    %441 = vmatprep.subr.mxu0 0.0
    %442 = vmatpush1.msra.mxu0 %v128
    %443 = vmatprep.subr.mxu0 0.0
    %444 = vmatpush1.msra.mxu0 %v127
    %445 = vmatprep.subr.mxu0 0.0
    %446 = vmatpush1.msra.mxu0 %v126
    %447 = vmatprep.subr.mxu0 0.0
    %448 = vmatpush1.msra.mxu0 %v125
    %449 = vmatprep.subr.mxu0 0.0
    %450 = vmatpush1.msra.mxu0 %v124
    %451 = vmatprep.subr.mxu0 0.0
    %452 = vmatpush1.msra.mxu0 %v123
    %453 = vmatprep.subr.mxu0 0.0
    %454 = vmatpush1.msra.mxu0 %v122
    %455 = vmatprep.subr.mxu0 0.0
    %456 = vmatpush1.msra.mxu0 %v121
    %457 = vmatprep.subr.mxu0 0.0
    %458 = vmatpush2.msra.mxu0 %v152
    %459 = vmatprep.subr.mxu0 0.0
    %460 = vmatpush2.msra.mxu0 %v151
    %461 = vmatprep.subr.mxu0 0.0
    %462 = vmatpush2.msra.mxu0 %v150
    %463 = vmatprep.subr.mxu0 0.0
    %464 = vmatpush2.msra.mxu0 %v149
    %465 = vmatprep.subr.mxu0 0.0
    %466 = vmatpush2.msra.mxu0 %v148
    %467 = vmatprep.subr.mxu0 0.0
    %468 = vmatpush2.msra.mxu0 %v147
    %469 = vmatprep.subr.mxu0 0.0
    %470 = vmatpush2.msra.mxu0 %v146
    %471 = vmatprep.subr.mxu0 0.0
    %472 = vmatpush2.msra.mxu0 %v145
    %473 = vmatprep.subr.mxu0 0.0
    %474 = vmatpush2.msra.mxu0 %v144
    %475 = vmatprep.subr.mxu0 0.0
    %476 = vmatpush2.msra.mxu0 %v143
    %477 = vmatprep.subr.mxu0 0.0
    %478 = vmatpush2.msra.mxu0 %v142
    %479 = vmatprep.subr.mxu0 0.0
    %480 = vmatpush2.msra.mxu0 %v141
    %481 = vmatprep.subr.mxu0 0.0
    %482 = vmatpush2.msra.mxu0 %v140
    %483 = vmatprep.subr.mxu0 0.0
    %484 = vmatpush2.msra.mxu0 %v139
    %485 = vmatprep.subr.mxu0 0.0
    %486 = vmatpush2.msra.mxu0 %v138
    %487 = vmatprep.subr.mxu0 0.0
    %488 = vmatpush2.msra.mxu0 %v137
    %489 = vmatprep.mubr.f32.mxu0 %v84
    %490 = vmatmul.mubr.f32.gmra.mxu0 %v83
    %v491 = vpop.f32.mrf.mxu0
    %v492 = vadd.f32 %v422, %v491
    %v493 = vpop.f32.mrf.mxu0
    %494 = vdwg.mxu0
    %v495 = vlaneseq
    %v496 = vshrl.u32 %v495, 7
    %v497 = vsub.s32 0, %v496
    %v498 = vrot.slane %v281, %v497
    %v499 = vadd.f32 %v492, %v498
    %v500 = vrot.slane %v499, 4
    %v501 = vadd.f32 %v499, %v500
    %v502 = vrot.slane %v501, 2
    %v503 = vadd.f32 %v501, %v502
    %v504 = vrot.slane %v503, 1
    %v505 = vadd.f32 %v503, %v504
    %v506 = vrcp.pop 8.0
    %v507 = vmul.f32 %v505, %v506
    %v508 = vmul.f32 %v499, %v499
    %v509 = vrot.slane %v508, 4
    %v510 = vadd.f32 %v508, %v509
    %v511 = vrot.slane %v510, 2
    %v512 = vadd.f32 %v510, %v511
    %v513 = vrot.slane %v512, 1
    %v514 = vadd.f32 %v512, %v513
    %v515 = vmul.f32 %v514, %v506
    %v516 = vmul.f32 %v507, %v507
    %v517 = vsub.f32 %v515, %v516
    %v518 = vsub.f32 %v499, %v507
    %v519 = vadd.f32 %v517, 1e-05
    %v520 = vrsqrt.pop %v519
    %v521 = vmul.f32 %v282, %v520
    %v522 = vlaneseq
    %v523 = vshrl.u32 %v522, 7
    %v524 = vsub.s32 0, %v523
    %v525 = vrot.slane %v521, %v524
    %v526 = vmul.f32 %v518, %v525
    %v527 = vlaneseq
    %v528 = vshrl.u32 %v527, 7
    %v529 = vsub.s32 0, %v528
    %v530 = vrot.slane %v283, %v529
    %v531 = vadd.f32 %v526, %v530
    %v532 = vmul.f32 %v531, %v531
    %533 = vadd.xlane.f32.xlu0 %v532
    %v534 = vpop.xlane.xlu0 %533
    %v535 = vrsqrt.pop %v534
    %v536 = vmul.f32 %v534, %v535
    %vm537 = vcmp.eq.f32.partialorder %v534, inf
    %v538 = vsel %vm537, %v534, %v536
    %vm539 = vcmp.eq.f32.partialorder %v534, 0.0
    %v540 = vand.u32 %v534, 2147483648
    %v541 = vsel %vm539, %v540, %v538
    %v542 = vmax.f32 %v534, 1e-24
    %v543 = vrsqrt.pop %v542
    %v544 = vmul.f32 %v531, %v543
    %v545 = vrot.slane %v541, 4
    %v546 = vadd.f32 %v541, %v545
    %v547 = vrot.slane %v546, 2
    %v548 = vadd.f32 %v546, %v547
    %v549 = vrot.slane %v548, 1
    %v550 = vadd.f32 %v548, %v549
    %v551 = vmul.f32 %v550, %v506
    %v552 = vmul.f32 %v541, %v541
    %v553 = vrot.slane %v552, 4
    %v554 = vadd.f32 %v552, %v553
    %v555 = vrot.slane %v554, 2
    %v556 = vadd.f32 %v554, %v555
    %v557 = vrot.slane %v556, 1
    %v558 = vadd.f32 %v556, %v557
    %v559 = vmul.f32 %v558, %v506
    %v560 = vmul.f32 %v551, %v551
    %v561 = vsub.f32 %v559, %v560
    %v562 = vsub.f32 %v541, %v551
    %v563 = vadd.f32 %v561, 1e-05
    %v564 = vrsqrt.pop %v563
    %v565 = vmul.f32 %v284, %v564
    %v566 = vlaneseq
    %v567 = vshrl.u32 %v566, 7
    %v568 = vsub.s32 0, %v567
    %v569 = vrot.slane %v565, %v568
    %v570 = vmul.f32 %v562, %v569
    %v571 = vlaneseq
    %v572 = vshrl.u32 %v571, 7
    %v573 = vsub.s32 0, %v572
    %v574 = vrot.slane %v284, %v573
    %576 = vrot.lane.b32.xlu0 %v574, 127
    %v577 = vpop.permute.xlu0 %576
    %v579 = vadd.f32 %v570, %v577
    %v580 = vlaneseq
    %v581 = vand.u32 %v580, 127
    %vm582 = vcmp.eq.s32.totalorder %v581, 64
    %584 = vset.pattern.permute.xlu0 0
    %585 = vperm.xlu0 %584, %v579
    %v586 = vpop.permute.xlu0 %585
    %v588 = vsel %vm582, %v586, %v544
    %589 = vst [vmem:[#allocation11] sm:$0xff] %v588
    // Predicated region
    $region42: #{tpu_custom_call.1} parent=1 // pred_check
      _
    $region43: #{tpu_custom_call.1} parent=1 // pred_check_branch
      %591 = sbr.rel (0) target = $region45
    $region44: #{tpu_custom_call.1} parent=1 // pred_region
      %s593 = ssub.s32 128, 128
      %594 = vsyncadd [#allocation4], %s593
      %s596 = sshll.u32 [#allocation11], 4
      %s597 = int_to_ptr.vmem [resolvable:$true] %s596
      %599 = dma.vmem_to_hbm [thread:$0]  %s597, 128, %s5, [#allocation4]
    $region45: #{tpu_custom_call.1} parent=1 // pred_fallthru
      _
    // Predicated region
    $region46: #{tpu_custom_call.1} parent=1 // pred_check
      _
    $region47: #{tpu_custom_call.1} parent=1 // pred_check_branch
      %601 = sbr.rel (0) target = $region49
    $region48: #{tpu_custom_call.1} parent=1 // pred_region
      %602 = dma.done [#allocation4], 128
    $region49: #{tpu_custom_call.1} parent=1 // pred_fallthru
      _
    %603 = vsyncpa [#allocation3], 1
    %604 = vsyncpa [#allocation6], 1
    %605 = vsyncpa [#allocation9], 1
    %606 = vsyncpa [#allocation4], 1

</llo_original>
